<compile_context>
chip_gen: v7x
topology: tpu7x:2x2x1
jax: 0.10.0
libtpu: 0.0.40
codegen_flags: <defaults>
</compile_context>

<pallas_src>
import numpy as np
import jax
import jax.numpy as jnp
from jax.experimental import pallas as pl
from jax.experimental.pallas import tpu as pltpu

LRELU_SLOPE = 0.1  # config.model.lrelu_slope (HiFi-GAN default)


def get_padding(kernel_size, dilation=1):
    return int((kernel_size * dilation - dilation) / 2)


def _vmem_limit_bytes():
    """Generation-aware scoped-VMEM budget (v7x: 64 MiB/TC, v5e/v6e: 128 MiB)."""
    try:
        cap = pltpu.get_tpu_info().vmem_capacity_bytes
        return int(min(cap * 3 // 4, 96 * 1024 * 1024))
    except Exception:
        return None  # fall back to compiler default


_VMEM_LIMIT = _vmem_limit_bytes()


def _pick_cout_tile(c_out):
    # Keep weight blocks <= ~5 MiB (bf16) while staying lane-dense (mult of 128).
    if c_out > 512 and c_out % 512 == 0:
        return 512
    return c_out


def _row_tile(rows):
    # Row tile for the flattened (N*H_out) axis: big enough to fill the MXU M
    # dimension, small enough that (tm, K*C_in) bf16 double-buffers fit VMEM.
    if rows < 8:
        return rows                      # equals full dim -> legal block shape
    if rows <= 512:
        return ((rows + 7) // 8) * 8     # one tile, sublane-aligned
    return 512


# ----------------------------------------------------------------------------- kernels

def _make_matmul_kernel(apply_act, slope=LRELU_SLOPE):
    """Strided conv as one flat matmul block: (tm, K*C_in) @ (K*C_in, tC)."""

    def kernel(xp_ref, w_ref, b_ref, o_ref):
        acc = jnp.dot(xp_ref[...], w_ref[...], preferred_element_type=jnp.float32)
        acc = acc + b_ref[...]
        if apply_act:
            acc = jnp.where(acc >= 0.0, acc, slope * acc)          # leaky_relu
        # torch.nan_to_num: nan -> 0, +inf -> f32 max, -inf -> f32 min
        acc = jnp.where(jnp.isnan(acc), 0.0, acc)
        fmax = jnp.finfo(jnp.float32).max
        acc = jnp.clip(acc, -fmax, fmax)
        o_ref[...] = acc.astype(o_ref.dtype)

    return kernel


def _make_halo_kernel(K, H_out, apply_act, slope=LRELU_SLOPE):
    """Stride-1 conv: padded activation block (1,Hp,C_in), K shifted in-kernel views."""

    def kernel(xp_ref, w_ref, b_ref, o_ref):
        acc = jnp.dot(xp_ref[0, 0:H_out, :], w_ref[0],
                      preferred_element_type=jnp.float32)
        for k in range(1, K):                                      # static unroll
            acc = acc + jnp.dot(xp_ref[0, k:k + H_out, :], w_ref[k],
                                preferred_element_type=jnp.float32)
        acc = acc + b_ref[...]
        if apply_act:
            acc = jnp.where(acc >= 0.0, acc, slope * acc)
        acc = jnp.where(jnp.isnan(acc), 0.0, acc)
        fmax = jnp.finfo(jnp.float32).max
        acc = jnp.clip(acc, -fmax, fmax)
        o_ref[0] = acc.astype(o_ref.dtype)

    return kernel


# --------------------------------------------------------------------------- wrappers

def conv_strided(x, w, b, stride, pad, apply_act):
    """x: (N,H,C_in) f32, w: (K,C_in,C_out), b: (C_out,) -> (N,H_out,C_out) f32."""
    N, H, C_in = x.shape
    K, _, C_out = w.shape

    xp = jnp.pad(x, ((0, 0), (pad, pad), (0, 0)))                  # zero pad
    Hp = H + 2 * pad
    H_out = (Hp - K) // stride + 1
    span = (H_out - 1) * stride + 1
    KC = K * C_in

    # Lane-dense bf16 im2col patches, flattened to rows so every matmul block
    # has a large M dimension regardless of per-sequence H_out.
    patches = jnp.concatenate(
        [xp[:, k:k + span:stride, :] for k in range(K)], axis=-1)
    R = N * H_out
    patches = patches.reshape(R, KC).astype(jnp.bfloat16)

    tm = _row_tile(R)
    Rp = ((R + tm - 1) // tm) * tm
    if Rp != R:
        patches = jnp.pad(patches, ((0, Rp - R), (0, 0)))          # exact grid divide

    w2 = w.reshape(KC, C_out).astype(jnp.bfloat16)
    b2 = b.reshape(1, C_out).astype(jnp.float32)

    tC = _pick_cout_tile(C_out)
    n_c = C_out // tC
    n_r = Rp // tm

    # Pick the iteration order that streams the larger operand only once
    # (the block whose index is constant along the inner axis is not re-DMA'd).
    w_bytes = KC * C_out * 2
    p_bytes = Rp * KC * 2
    c_outer = (w_bytes + n_c * p_bytes) <= (p_bytes + n_r * w_bytes)

    if c_outer:
        grid = (n_c, n_r)
        in_specs = [pl.BlockSpec((tm, KC), lambda c, r: (r, 0)),
                    pl.BlockSpec((KC, tC), lambda c, r: (0, c)),
                    pl.BlockSpec((1, tC), lambda c, r: (0, c))]
        out_spec = pl.BlockSpec((tm, tC), lambda c, r: (r, c))
    else:
        grid = (n_r, n_c)
        in_specs = [pl.BlockSpec((tm, KC), lambda r, c: (r, 0)),
                    pl.BlockSpec((KC, tC), lambda r, c: (0, c)),
                    pl.BlockSpec((1, tC), lambda r, c: (0, c))]
        out_spec = pl.BlockSpec((tm, tC), lambda r, c: (r, c))

    out = pl.pallas_call(
        _make_matmul_kernel(apply_act),
        out_shape=jax.ShapeDtypeStruct((Rp, C_out), jnp.float32),
        grid=grid,
        in_specs=in_specs,
        out_specs=out_spec,
        compiler_params=pltpu.CompilerParams(
            dimension_semantics=("parallel", "parallel"),
            vmem_limit_bytes=_VMEM_LIMIT),
    )(patches, w2, b2)
    return out[:R].reshape(N, H_out, C_out)


def conv_stride1(x, w, b, pad, apply_act):
    """Stride-1 conv (layer 5 / conv_post) without im2col expansion (halo in-kernel)."""
    N, H, C_in = x.shape
    K, _, C_out = w.shape

    xp = jnp.pad(x, ((0, 0), (pad, pad), (0, 0))).astype(jnp.bfloat16)
    Hp = H + 2 * pad
    H_out = Hp - K + 1
    wb = w.astype(jnp.bfloat16)
    b2 = b.reshape(1, C_out).astype(jnp.float32)

    tC = _pick_cout_tile(C_out)
    grid = (C_out // tC, N)     # c outer -> weight block DMA'd once per c-tile sweep
    # TODO(synk): for real-sized inputs an M-batched variant (merging several
    # sequences' rows before the matmul) would fill the MXU better; it needs an
    # in-kernel (nb, H_out) -> (nb*H_out) relayout which is kept out for safety.
    # TODO(synk): conv_post (C_out=1) output stays (N,H_out,1); a lane-dense
    # epilogue would avoid masked stores but its traffic is negligible vs the
    # 1024-channel bf16 input this kernel already streams exactly once.
    return pl.pallas_call(
        _make_halo_kernel(K, H_out, apply_act),
        out_shape=jax.ShapeDtypeStruct((N, H_out, C_out), jnp.float32),
        grid=grid,
        in_specs=[
            pl.BlockSpec((1, Hp, C_in), lambda c, n: (n, 0, 0)),
            pl.BlockSpec((K, C_in, tC), lambda c, n: (0, 0, c)),
            pl.BlockSpec((1, tC), lambda c, n: (0, c)),
        ],
        out_specs=pl.BlockSpec((1, H_out, tC), lambda c, n: (n, 0, c)),
        compiler_params=pltpu.CompilerParams(
            dimension_semantics=("parallel", "parallel"),
            vmem_limit_bytes=_VMEM_LIMIT),
    )(xp, wb, b2)


# ------------------------------------------------------------------------ module glue

def _to_nchw(xk, b, period):
    """(b*period, H, C) -> (b, C, H, period)   (matches torch NCHW feature maps)."""
    N, H, C = xk.shape
    return jnp.transpose(xk.reshape(b, period, H, C), (0, 3, 2, 1))


def init_params(key, kernel_size=5):
    """Deterministic synthetic parameters (weight_norm folded into plain weights)."""
    layer_io = [(1, 32), (32, 128), (128, 512), (512, 1024), (1024, 1024)]
    params = {"convs": []}
    for cin, cout in layer_io:
        key, kw, kb = jax.random.split(key, 3)
        scale = 1.0 / np.sqrt(cin * kernel_size)
        w = jax.random.normal(kw, (kernel_size, cin, cout), jnp.float32) * scale
        bb = jax.random.normal(kb, (cout,), jnp.float32) * 0.01
        params["convs"].append((w, bb))
    key, kw, kb = jax.random.split(key, 3)
    w = jax.random.normal(kw, (3, 1024, 1), jnp.float32) * (1.0 / np.sqrt(1024 * 3))
    bb = jax.random.normal(kb, (1,), jnp.float32) * 0.01
    params["conv_post"] = (w, bb)
    return params


def discriminator_p_forward(x, params, period, kernel_size=5, stride=3):
    """x: (b, c, t) float32 -> (flattened logits (b, -1), fmap list in NCHW)."""
    b, c, t = x.shape
    if t % period != 0:
        n_pad = period - t % period
        x = jnp.pad(x, ((0, 0), (0, 0), (0, n_pad)), mode="reflect")
        t = t + n_pad
    H = t // period
    x4 = x.reshape(b, c, H, period)                                  # NCHW view
    xk = jnp.transpose(x4, (0, 3, 2, 1)).reshape(b * period, H, c)   # -> (N, H, C)

    fmap = []
    pad = get_padding(5, 1)
    cfg = [(stride, pad), (stride, pad), (stride, pad), (stride, pad), (1, 2)]
    for (w, bi), (s, p) in zip(params["convs"], cfg):
        if s == 1:
            xk = conv_stride1(xk, w, bi, p, apply_act=True)
        else:
            xk = conv_strided(xk, w, bi, s, p, apply_act=True)
        fmap.append(_to_nchw(xk, b, period))
    w, bi = params["conv_post"]
    xk = conv_stride1(xk, w, bi, 1, apply_act=False)
    fmap.append(_to_nchw(xk, b, period))

    out = fmap[-1].reshape(b, -1)   # torch.flatten(x, 1, -1) on (b, 1, Hf, period)
    return out, fmap


# --------------------------------------------------------------------- pure-JAX check

def _ref_layer(xk, w, bi, stride, pad, apply_act):
    """Reference with the same bf16-input / f32-accumulate numerics as the kernels."""
    N, H, C_in = xk.shape
    K = w.shape[0]
    xp = jnp.pad(xk, ((0, 0), (pad, pad), (0, 0)))
    Hp = H + 2 * pad
    H_out = (Hp - K) // stride + 1
    xb = xp.astype(jnp.bfloat16)
    wb = w.astype(jnp.bfloat16)
    if stride == 1:
        acc = sum(jnp.einsum("nhc,cd->nhd", xb[:, k:k + H_out, :], wb[k],
                             preferred_element_type=jnp.float32) for k in range(K))
    else:
        span = (H_out - 1) * stride + 1
        patches = jnp.concatenate(
            [xb[:, k:k + span:stride, :] for k in range(K)], axis=-1)
        acc = jnp.einsum("nhk,kd->nhd", patches, wb.reshape(K * C_in, -1),
                         preferred_element_type=jnp.float32)
    acc = acc + bi.astype(jnp.float32)
    if apply_act:
        acc = jnp.where(acc >= 0.0, acc, LRELU_SLOPE * acc)
    acc = jnp.where(jnp.isnan(acc), 0.0, acc)
    fmax = jnp.finfo(jnp.float32).max
    return jnp.clip(acc, -fmax, fmax)


def _ref_forward(x, params, period):
    b, c, t = x.shape
    if t % period != 0:
        x = jnp.pad(x, ((0, 0), (0, 0), (0, period - t % period)), mode="reflect")
        t = x.shape[-1]
    H = t // period
    xk = jnp.transpose(x.reshape(b, c, H, period), (0, 3, 2, 1)).reshape(b * period, H, c)
    cfg = [(3, 2), (3, 2), (3, 2), (3, 2), (1, 2)]
    for (w, bi), (s, p) in zip(params["convs"], cfg):
        xk = _ref_layer(xk, w, bi, s, p, True)
    w, bi = params["conv_post"]
    xk = _ref_layer(xk, w, bi, 1, 1, False)
    return _to_nchw(xk, b, period).reshape(b, -1)


# --------------------------------------------------------------------------------- main

if __name__ == "__main__":
    key = jax.random.PRNGKey(0)
    k_x, k_p = jax.random.split(key)

    b, c, t = 2, 1, 16
    period = 3                      # exercises the reflect-padding branch (16 % 3 != 0)
    x = jax.random.normal(k_x, (b, c, t), jnp.float32)
    params = init_params(k_p)

    out, fmap = discriminator_p_forward(x, params, period)
    out = jax.block_until_ready(out)
    fmap = [jax.block_until_ready(f) for f in fmap]

    ref = jax.block_until_ready(_ref_forward(x, params, period))
    np.testing.assert_allclose(np.asarray(out), np.asarray(ref), rtol=5e-3, atol=5e-3)

    print("KERNEL_OK")
</pallas_src>

<mosaic_0001>
module attributes {stable_mosaic.version = 11 : i64} {
  func.func @kernel(%arg0: i32, %arg1: i32, %arg2: memref<16x5xbf16, #tpu.memory_space<vmem>>, %arg3: memref<5x32xbf16, #tpu.memory_space<vmem>>, %arg4: memref<1x32xf32, #tpu.memory_space<vmem>>, %arg5: memref<16x32xf32, #tpu.memory_space<vmem>>) attributes {dimension_semantics = [#tpu.dimension_semantics<parallel>, #tpu.dimension_semantics<parallel>], iteration_bounds = array<i64: 1, 1>, scalar_prefetch = 0 : i64, scratch_operands = 0 : i64, tpu.core_type = #tpu.core_type<tc>, window_params = [{transform_indices = @transform_0, window_bounds = array<i64: 16, 5>}, {transform_indices = @transform_1, window_bounds = array<i64: 5, 32>}, {transform_indices = @transform_2, window_bounds = array<i64: 1, 32>}, {transform_indices = @transform_3, window_bounds = array<i64: 16, 32>}]} {
    %c0 = arith.constant 0 : index
    %c0_0 = arith.constant 0 : index
    %0 = vector.load %arg2[%c0, %c0_0] : memref<16x5xbf16, #tpu.memory_space<vmem>>, vector<16x5xbf16>
    %c0_1 = arith.constant 0 : index
    %c0_2 = arith.constant 0 : index
    %1 = vector.load %arg3[%c0_1, %c0_2] : memref<5x32xbf16, #tpu.memory_space<vmem>>, vector<5x32xbf16>
    %cst = arith.constant dense<0.000000e+00> : vector<16x32xf32>
    %2 = tpu.matmul %0, %1, %cst {dimension_numbers = #tpu.dot_dimension_numbers<[1], [0], [0], [1], [0, 0, 1, 1], [], []>} : vector<16x5xbf16>, vector<5x32xbf16>, vector<16x32xf32> -> vector<16x32xf32>
    %c0_3 = arith.constant 0 : index
    %c0_4 = arith.constant 0 : index
    %3 = vector.load %arg4[%c0_3, %c0_4] : memref<1x32xf32, #tpu.memory_space<vmem>>, vector<1x32xf32>
    %4 = vector.broadcast %3 : vector<1x32xf32> to vector<16x32xf32>
    %5 = arith.addf %2, %4 : vector<16x32xf32>
    %cst_5 = arith.constant 0.000000e+00 : f32
    %6 = vector.broadcast %cst_5 : f32 to vector<16x32xf32>
    %7 = arith.cmpf oge, %5, %6 : vector<16x32xf32>
    %cst_6 = arith.constant 1.000000e-01 : f32
    %8 = vector.broadcast %cst_6 : f32 to vector<16x32xf32>
    %9 = arith.mulf %8, %5 : vector<16x32xf32>
    %10 = arith.select %7, %5, %9 : vector<16x32xi1>, vector<16x32xf32>
    %11 = arith.cmpf one, %10, %10 : vector<16x32xf32>
    %cst_7 = arith.constant 0.000000e+00 : f32
    %12 = vector.broadcast %cst_7 : f32 to vector<16x32xf32>
    %13 = arith.select %11, %12, %10 : vector<16x32xi1>, vector<16x32xf32>
    %cst_8 = arith.constant -3.40282347E+38 : f32
    %cst_9 = arith.constant 3.40282347E+38 : f32
    %14 = vector.broadcast %cst_8 : f32 to vector<16x32xf32>
    %15 = arith.maximumf %14, %13 : vector<16x32xf32>
    %16 = vector.broadcast %cst_9 : f32 to vector<16x32xf32>
    %17 = arith.minimumf %16, %15 : vector<16x32xf32>
    %c0_10 = arith.constant 0 : index
    %c0_11 = arith.constant 0 : index
    %18 = vector.load %arg5[%c0_10, %c0_11] : memref<16x32xf32, #tpu.memory_space<vmem>>, vector<16x32xf32>
    tpu.vector_store %arg5[%c0_10, %c0_11], %17 {strides = array<i32>} : memref<16x32xf32, #tpu.memory_space<vmem>>, vector<16x32xf32>,
    return
  }
  func.func @transform_0(%arg0: i32, %arg1: i32) -> (i32, i32) {
    %c0_i32 = arith.constant 0 : i32
    %c0_i32_0 = arith.constant 0 : i32
    return %arg1, %c0_i32 : i32, i32
  }
  func.func @transform_1(%arg0: i32, %arg1: i32) -> (i32, i32) {
    %c0_i32 = arith.constant 0 : i32
    %c0_i32_0 = arith.constant 0 : i32
    return %c0_i32, %arg0 : i32, i32
  }
  func.func @transform_2(%arg0: i32, %arg1: i32) -> (i32, i32) {
    %c0_i32 = arith.constant 0 : i32
    %c0_i32_0 = arith.constant 0 : i32
    return %c0_i32, %arg0 : i32, i32
  }
  func.func @transform_3(%arg0: i32, %arg1: i32) -> (i32, i32) {
    %c0_i32 = arith.constant 0 : i32
    return %arg1, %arg0 : i32, i32
  }
}

</mosaic_0001>

<llo_original>
// kernel: tpu_custom_call.1
$region0: #{tpu_custom_call.1}
  #allocation0 [shape = 'u32[]', space=smem, size = 0x4, offset = 0x4, fixed_abs, tag = 'smem constant byte address 0x4 - core index']
  #allocation1 [shape = 'u32[144,128]{1,0:T(1,128)}', space=vmem, size = 0x12000, scoped, tag = 'internal scratch']
  %s0 = inlined_call_operand.vmem [shape: bf16[16,5], index: 0, kind: input, shape index: {}]
  %s1 = inlined_call_operand.vmem [shape: bf16[5,32], index: 1, kind: input, shape index: {}]
  %s2 = inlined_call_operand.vmem [shape: f32[1,32], index: 2, kind: input, shape index: {}]
  %s3 = inlined_call_operand.hbm [shape: f32[16,32], index: 3, kind: output, shape index: {}]
  %s4 = sld [smem:[#allocation0]]
  $region22: #{tpu_custom_call.1} parent=0
    _
  %s6 = ssub.s32 1, %s4
  %s7 = scalar_select 0, %s6, %s4
  $region1: #{tpu_custom_call.1} parent=0
    #allocation2 [shape = 'u8[8192]{0}', space=vmem, size = 0x2000, scoped, tag = 'output window, operand 0, single buffered']
    #allocation3 [shape = 's32[1]{0}', space=sflag, size = 0x4, scoped, tag = 'scoped memory for tpu_custom_call.1']
    %8 = vsyncpa [#allocation3], 0
    // Predicated region
    $region2: #{tpu_custom_call.1} parent=1 // pred_check
      _
    $region3: #{tpu_custom_call.1} parent=1 // pred_check_branch
      %10 = sbr.rel (0) target = $region5
    $region4: #{tpu_custom_call.1} parent=1 // pred_region
      _
    $region5: #{tpu_custom_call.1} parent=1 // pred_fallthru
      _
    // Predicated region
    $region6: #{tpu_custom_call.1} parent=1 // pred_check
      _
    $region7: #{tpu_custom_call.1} parent=1 // pred_check_branch
      %12 = sbr.rel (0) target = $region9
    $region8: #{tpu_custom_call.1} parent=1 // pred_region
      _
    $region9: #{tpu_custom_call.1} parent=1 // pred_fallthru
      _
    // Predicated region
    $region10: #{tpu_custom_call.1} parent=1 // pred_check
      _
    $region11: #{tpu_custom_call.1} parent=1 // pred_check_branch
      %14 = sbr.rel (0) target = $region13
    $region12: #{tpu_custom_call.1} parent=1 // pred_region
      _
    $region13: #{tpu_custom_call.1} parent=1 // pred_fallthru
      _
    %v16 = vld [vmem:[%s0] sm:$0xf]
    %v17 = vld [vmem:[%s0 + $0x4] sm:$0xf]
    %v18 = vld [vmem:[%s1] sm:$0x7]
    %v19 = vld [vmem:[%s2] sm:$0x1]
    %v21 = vlaneseq
    %v22 = vshrl.u32 %v21, 7
    %v23 = vsub.s32 0, %v22
    %v24 = vrot.slane %v19, %v23
    %v28 = vunpack.c.l.b16 %v16
    %v29 = vunpack.c.l.b16 %v17
    %v30 = vpack.c.b16 %v29, %v28
    %vm31 = vcmask 39936
    %v33 = vsel %vm31, %v30, 0
    %vm35 = vcmask 1041408
    %vm36 = vcmask 1042432
    %v37 = vsel %vm35, 4294967295, 65535
    %v38 = vsel %vm36, %v37, 0
    %v40 = vand.u32 %v18, %v38
    %42 = vmatprep.subr.bf16.mxu0 0
    %43 = vmatpush1.bf16.msra.mxu0 %v40
    %44 = vmatprep.subr.bf16.mxu0 0
    %45 = vmatpush1.bf16.msra.mxu0 0
    %46 = vmatprep.subr.bf16.mxu0 0
    %47 = vmatpush1.bf16.msra.mxu0 0
    %48 = vmatprep.subr.bf16.mxu0 0
    %49 = vmatpush1.bf16.msra.mxu0 0
    %50 = vmatprep.subr.bf16.mxu0 0
    %51 = vmatpush1.bf16.msra.mxu0 0
    %52 = vmatprep.subr.bf16.mxu0 0
    %53 = vmatpush1.bf16.msra.mxu0 0
    %54 = vmatprep.subr.bf16.mxu0 0
    %55 = vmatpush1.bf16.msra.mxu0 0
    %56 = vmatprep.subr.bf16.mxu0 0
    %57 = vmatpush1.bf16.msra.mxu0 0
    %58 = vmatprep.subr.bf16.mxu0 0
    %59 = vmatpush1.bf16.msra.mxu0 0
    %60 = vmatprep.subr.bf16.mxu0 0
    %61 = vmatpush1.bf16.msra.mxu0 0
    %62 = vmatprep.subr.bf16.mxu0 0
    %63 = vmatpush1.bf16.msra.mxu0 0
    %64 = vmatprep.subr.bf16.mxu0 0
    %65 = vmatpush1.bf16.msra.mxu0 0
    %66 = vmatprep.subr.bf16.mxu0 0
    %67 = vmatpush1.bf16.msra.mxu0 0
    %68 = vmatprep.subr.bf16.mxu0 0
    %69 = vmatpush1.bf16.msra.mxu0 0
    %70 = vmatprep.subr.bf16.mxu0 0
    %71 = vmatpush1.bf16.msra.mxu0 0
    %72 = vmatprep.subr.bf16.mxu0 0
    %73 = vmatpush1.bf16.msra.mxu0 0
    %74 = vmatprep.mubr.bf16.mxu0 0
    %75 = vmatmul.mubr.bf16.gmra.mrb[0].mxu0 %v33
    %v76 = vpop.f32.mrb[0].mxu0
    %v77 = vadd.f32 %v24, %v76
    %v78 = vpop.f32.mrb[0].mxu0
    %v79 = vpop.f32.mrb[0].mxu0
    %v80 = vadd.f32 %v24, %v79
    %v81 = vpop.f32.mrb[0].mxu0
    %82 = vdwg.mxu0
    %vm83 = vcmp.ge.f32.partialorder %v77, 0.0
    %vm84 = vcmp.ge.f32.partialorder %v80, 0.0
    %v85 = vmul.f32 %v77, 0.1
    %v86 = vmul.f32 %v80, 0.1
    %v87 = vsel %vm83, %v77, %v85
    %v88 = vsel %vm84, %v80, %v86
    %vm89 = vcmp.ne.f32.partialorder %v87, %v87
    %vm90 = vcmp.ne.f32.partialorder %v88, %v88
    %v91 = vsel %vm89, 0.0, %v87
    %v92 = vsel %vm90, 0.0, %v88
    %v93 = vmax.f32 %v91, -3.4028235e+38
    %v94 = vmax.f32 %v92, -3.4028235e+38
    %v95 = vmin.f32 %v93, 3.4028235e+38
    %v96 = vmin.f32 %v94, 3.4028235e+38
    %vm97 = vcmask 261120
    %98 = vst.msk [vmem:[#allocation2] sm:$0xff] %vm97, %v95
    %99 = vst.msk [vmem:[#allocation2 + $0x8] sm:$0xff] %vm97, %v96
    // Predicated region
    $region14: #{tpu_custom_call.1} parent=1 // pred_check
      _
    $region15: #{tpu_custom_call.1} parent=1 // pred_check_branch
      %101 = sbr.rel (0) target = $region17
    $region16: #{tpu_custom_call.1} parent=1 // pred_region
      %s103 = ssub.s32 256, 256
      %104 = vsyncadd [#allocation3], %s103
      %s105 = sshll.u32 [#allocation2], 4
      %s106 = int_to_ptr.vmem [resolvable:$true] %s105
      %111 = dma.vmem_to_hbm [thread:$0]  %s106, 256, %s3, [#allocation3], 128, 128, 8
    $region17: #{tpu_custom_call.1} parent=1 // pred_fallthru
      _
    // Predicated region
    $region18: #{tpu_custom_call.1} parent=1 // pred_check
      _
    $region19: #{tpu_custom_call.1} parent=1 // pred_check_branch
      %113 = sbr.rel (0) target = $region21
    $region20: #{tpu_custom_call.1} parent=1 // pred_region
      %114 = dma.done [#allocation3], 256
    $region21: #{tpu_custom_call.1} parent=1 // pred_fallthru
      _
    %115 = vsyncpa [#allocation3], 1

</llo_original>
